<compile_context>
chip_gen: v7x
topology: tpu7x:2x2x1
jax: 0.10.0
libtpu: 0.0.40
codegen_flags: <defaults>
</compile_context>

<pallas_src>
import jax
import jax.numpy as jnp
from jax.experimental import pallas as pl
from jax.experimental.pallas import tpu as pltpu

# ---- problem sizes (small, deterministic) ----
B = 2          # batch
N = 8          # graph nodes
C = 32         # channels / hidden
NUM_BLOCKS = 2


def encoder_decoder_kernel(xa_ref, w_ref, b_ref, out_ref):
    """Fused EncoderDecoder forward (node-major, zero in-kernel relayouts).

    xa_ref:  (N, B*C + N)     bf16  [x node-major | adj]
    w_ref:   (K, 2, B*C, B*C) bf16  [:,0] = kron(I_B, W_enc[k])
                                    [:,1] = kron(I_B, W_skip[k] @ W_dec)
    b_ref:   (K, 1, B*C)      f32   batch-tiled encoder biases
    out_ref: (N, B*C)         f32   decoded skip accumulator (native layout)
    """
    n, bc = out_ref.shape
    num_blocks = w_ref.shape[0]

    x = xa_ref[:, :bc]                       # (N, B*C) bf16
    adj = xa_ref[:, bc:bc + n]               # (N, N)   bf16
    skip = jnp.zeros((n, bc), jnp.float32)   # accumulated in decoded space

    for k in range(num_blocks):              # static unroll (NUM_BLOCKS small)
        # graph mixing over nodes: (N,N) @ (N, B*C), f32 MXU accumulation
        g = jnp.dot(adj, x, preferred_element_type=jnp.float32)

        # channel mixing + bias + ReLU; block-diagonal weight keeps the
        # (N, B*C) layout, so no reshapes cross (8,128) tile boundaries.
        h = jnp.dot(g.astype(jnp.bfloat16), w_ref[k, 0],
                    preferred_element_type=jnp.float32) + b_ref[k]
        h = jnp.maximum(h, 0.0)                              # f32 elementwise

        h_bf = h.astype(jnp.bfloat16)                        # cast once, reuse
        # skip projection straight into decoded space (W_dec pre-folded)
        skip = skip + jnp.dot(h_bf, w_ref[k, 1],
                              preferred_element_type=jnp.float32)
        x = h_bf                                             # next block input

    out_ref[...] = skip                      # native layout; wrapper repacks


def encoder_decoder(x, adj, w_enc, b_enc, w_skip, w_dec, b_dec):
    """Wrapper: weight folding + layout plumbing, then one pallas_call."""
    b, n, c = x.shape
    num_blocks = w_enc.shape[0]
    bc = b * c

    # Fold decoder weight into each skip projection (exact: the decoder is
    # linear and applied to the skip sum).
    w_skip_dec = jnp.einsum('kcd,de->kce', w_skip, w_dec)

    # Block-diagonal kron(I_B, W) weights so all in-kernel matmuls operate on
    # the node-major (N, B*C) layout with no reshapes / transposes.
    eye_b = jnp.eye(b, dtype=jnp.float32)
    w_enc_blk = jnp.einsum('ab,kcd->kacbd', eye_b, w_enc).reshape(num_blocks, bc, bc)
    w_skip_blk = jnp.einsum('ab,kcd->kacbd', eye_b, w_skip_dec).reshape(num_blocks, bc, bc)
    w_all = jnp.stack([w_enc_blk, w_skip_blk], axis=1).astype(jnp.bfloat16)

    # Batch-tiled encoder biases, kept f32 (elementwise path stays f32).
    b_enc_t = jnp.tile(b_enc.reshape(num_blocks, 1, c), (1, 1, b)).astype(jnp.float32)

    # Node-major activations, adj packed into the same bf16 operand:
    # (B,N,C) -> (N,B,C) -> (N, B*C); xa = [x | adj] of shape (N, B*C + N).
    x_nm = jnp.transpose(x, (1, 0, 2)).reshape(n, bc)
    xa = jnp.concatenate([x_nm.astype(jnp.float32), adj], axis=1).astype(jnp.bfloat16)

    flops = 2 * num_blocks * (n * n * bc + 2 * n * bc * bc)
    bytes_accessed = xa.size * 2 + w_all.size * 2 + b_enc_t.size * 4 + n * bc * 4

    vmem = pl.BlockSpec(memory_space=pltpu.MemorySpace.VMEM)
    out_nm = pl.pallas_call(
        encoder_decoder_kernel,
        out_shape=jax.ShapeDtypeStruct((n, bc), jnp.float32),
        in_specs=[vmem, vmem, vmem],
        out_specs=vmem,
        cost_estimate=pl.CostEstimate(flops=flops, transcendentals=0,
                                      bytes_accessed=bytes_accessed),
    )(xa, w_all, b_enc_t)

    # native (N, B*C) slab -> (N,B,C) -> (B,N,C); decoder bias added here so
    # XLA fuses it into the layout plumbing (b_dec never enters the kernel).
    out = out_nm.reshape(n, b, c).transpose(1, 0, 2) + b_dec
    return out.astype(x.dtype)


def reference(x, adj, w_enc, b_enc, w_skip, w_dec, b_dec):
    """Pure-JAX f32 reference matching the PyTorch forward semantics."""
    skip = jnp.zeros_like(x)
    for k in range(NUM_BLOCKS):
        h = jnp.einsum('nm,bmc->bnc', adj, x)
        h = jnp.maximum(jnp.einsum('bnc,cd->bnd', h, w_enc[k]) + b_enc[k], 0.0)
        skip = skip + jnp.einsum('bnc,cd->bnd', h, w_skip[k])
        x = h
    return jnp.einsum('bnc,cd->bnd', skip, w_dec) + b_dec


if __name__ == "__main__":
    key = jax.random.PRNGKey(0)
    keys = jax.random.split(key, 8)

    x = jax.random.normal(keys[0], (B, N, C), dtype=jnp.float32)

    # symmetric, row-normalized adjacency (deterministic)
    a = jax.random.uniform(keys[1], (N, N), dtype=jnp.float32)
    adj = (a + a.T) * 0.5 + jnp.eye(N, dtype=jnp.float32)
    adj = adj / jnp.sum(adj, axis=-1, keepdims=True)

    scale = 1.0 / jnp.sqrt(jnp.float32(C))
    w_enc = jax.random.normal(keys[2], (NUM_BLOCKS, C, C), jnp.float32) * scale
    b_enc = jax.random.normal(keys[3], (NUM_BLOCKS, 1, C), jnp.float32) * 0.01
    w_skip = jax.random.normal(keys[4], (NUM_BLOCKS, C, C), jnp.float32) * scale
    w_dec = jax.random.normal(keys[5], (C, C), jnp.float32) * scale
    b_dec = jax.random.normal(keys[6], (1, C), jnp.float32) * 0.01

    out = encoder_decoder(x, adj, w_enc, b_enc, w_skip, w_dec, b_dec)
    out = jax.block_until_ready(out)

    ref = reference(x, adj, w_enc, b_enc, w_skip, w_dec, b_dec)
    assert out.shape == (B, N, C)
    # bf16 MXU operands + folded W_dec (f32 accumulation) vs f32 reference:
    # intentionally relaxed tolerance.
    assert jnp.allclose(out, ref, atol=5e-2, rtol=5e-2), "mismatch vs reference"

    print("KERNEL_OK")
</pallas_src>

<mosaic_0001>
module attributes {stable_mosaic.version = 11 : i64} {
  func.func @encoder_decoder_kernel(%arg0: memref<8x72xbf16, #tpu.memory_space<vmem>>, %arg1: memref<2x2x64x64xbf16, #tpu.memory_space<vmem>>, %arg2: memref<2x1x64xf32, #tpu.memory_space<vmem>>, %arg3: memref<8x64xf32, #tpu.memory_space<vmem>>) attributes {dimension_semantics = [], scalar_prefetch = 0 : i64, scratch_operands = 0 : i64, tpu.core_type = #tpu.core_type<tc>} {
    %c0 = arith.constant 0 : index
    %c0_0 = arith.constant 0 : index
    %0 = vector.load %arg0[%c0, %c0_0] : memref<8x72xbf16, #tpu.memory_space<vmem>>, vector<8x64xbf16>
    %c0_1 = arith.constant 0 : index
    %c64 = arith.constant 64 : index
    %1 = vector.load %arg0[%c0_1, %c64] : memref<8x72xbf16, #tpu.memory_space<vmem>>, vector<8x8xbf16>
    %cst = arith.constant 0.000000e+00 : f32
    %2 = vector.broadcast %cst : f32 to vector<8x64xf32>
    %cst_2 = arith.constant dense<0.000000e+00> : vector<8x64xf32>
    %3 = tpu.matmul %1, %0, %cst_2 {dimension_numbers = #tpu.dot_dimension_numbers<[1], [0], [0], [1], [0, 0, 1, 1], [], []>} : vector<8x8xbf16>, vector<8x64xbf16>, vector<8x64xf32> -> vector<8x64xf32>
    %4 = arith.truncf %3 : vector<8x64xf32> to vector<8x64xbf16>
    %c0_3 = arith.constant 0 : index
    %c0_4 = arith.constant 0 : index
    %c0_5 = arith.constant 0 : index
    %c0_6 = arith.constant 0 : index
    %5 = vector.load %arg1[%c0_3, %c0_4, %c0_5, %c0_6] : memref<2x2x64x64xbf16, #tpu.memory_space<vmem>>, vector<1x1x64x64xbf16>
    %6 = vector.shape_cast %5 : vector<1x1x64x64xbf16> to vector<64x64xbf16>
    %cst_7 = arith.constant dense<0.000000e+00> : vector<8x64xf32>
    %7 = tpu.matmul %4, %6, %cst_7 {dimension_numbers = #tpu.dot_dimension_numbers<[1], [0], [0], [1], [0, 0, 1, 1], [], []>} : vector<8x64xbf16>, vector<64x64xbf16>, vector<8x64xf32> -> vector<8x64xf32>
    %c0_8 = arith.constant 0 : index
    %c0_9 = arith.constant 0 : index
    %c0_10 = arith.constant 0 : index
    %8 = vector.load %arg2[%c0_8, %c0_9, %c0_10] : memref<2x1x64xf32, #tpu.memory_space<vmem>>, vector<1x1x64xf32>
    %9 = vector.shape_cast %8 : vector<1x1x64xf32> to vector<1x64xf32>
    %10 = vector.broadcast %9 : vector<1x64xf32> to vector<8x64xf32>
    %11 = arith.addf %7, %10 : vector<8x64xf32>
    %cst_11 = arith.constant 0.000000e+00 : f32
    %12 = vector.broadcast %cst_11 : f32 to vector<8x64xf32>
    %13 = arith.maximumf %11, %12 : vector<8x64xf32>
    %14 = arith.truncf %13 : vector<8x64xf32> to vector<8x64xbf16>
    %c0_12 = arith.constant 0 : index
    %c1 = arith.constant 1 : index
    %c0_13 = arith.constant 0 : index
    %c0_14 = arith.constant 0 : index
    %15 = vector.load %arg1[%c0_12, %c1, %c0_13, %c0_14] : memref<2x2x64x64xbf16, #tpu.memory_space<vmem>>, vector<1x1x64x64xbf16>
    %16 = vector.shape_cast %15 : vector<1x1x64x64xbf16> to vector<64x64xbf16>
    %cst_15 = arith.constant dense<0.000000e+00> : vector<8x64xf32>
    %17 = tpu.matmul %14, %16, %cst_15 {dimension_numbers = #tpu.dot_dimension_numbers<[1], [0], [0], [1], [0, 0, 1, 1], [], []>} : vector<8x64xbf16>, vector<64x64xbf16>, vector<8x64xf32> -> vector<8x64xf32>
    %18 = arith.addf %2, %17 : vector<8x64xf32>
    %cst_16 = arith.constant dense<0.000000e+00> : vector<8x64xf32>
    %19 = tpu.matmul %1, %14, %cst_16 {dimension_numbers = #tpu.dot_dimension_numbers<[1], [0], [0], [1], [0, 0, 1, 1], [], []>} : vector<8x8xbf16>, vector<8x64xbf16>, vector<8x64xf32> -> vector<8x64xf32>
    %20 = arith.truncf %19 : vector<8x64xf32> to vector<8x64xbf16>
    %c1_17 = arith.constant 1 : index
    %c0_18 = arith.constant 0 : index
    %c0_19 = arith.constant 0 : index
    %c0_20 = arith.constant 0 : index
    %21 = vector.load %arg1[%c1_17, %c0_18, %c0_19, %c0_20] : memref<2x2x64x64xbf16, #tpu.memory_space<vmem>>, vector<1x1x64x64xbf16>
    %22 = vector.shape_cast %21 : vector<1x1x64x64xbf16> to vector<64x64xbf16>
    %cst_21 = arith.constant dense<0.000000e+00> : vector<8x64xf32>
    %23 = tpu.matmul %20, %22, %cst_21 {dimension_numbers = #tpu.dot_dimension_numbers<[1], [0], [0], [1], [0, 0, 1, 1], [], []>} : vector<8x64xbf16>, vector<64x64xbf16>, vector<8x64xf32> -> vector<8x64xf32>
    %c1_22 = arith.constant 1 : index
    %c0_23 = arith.constant 0 : index
    %c0_24 = arith.constant 0 : index
    %24 = vector.load %arg2[%c1_22, %c0_23, %c0_24] : memref<2x1x64xf32, #tpu.memory_space<vmem>>, vector<1x1x64xf32>
    %25 = vector.shape_cast %24 : vector<1x1x64xf32> to vector<1x64xf32>
    %26 = vector.broadcast %25 : vector<1x64xf32> to vector<8x64xf32>
    %27 = arith.addf %23, %26 : vector<8x64xf32>
    %cst_25 = arith.constant 0.000000e+00 : f32
    %28 = vector.broadcast %cst_25 : f32 to vector<8x64xf32>
    %29 = arith.maximumf %27, %28 : vector<8x64xf32>
    %30 = arith.truncf %29 : vector<8x64xf32> to vector<8x64xbf16>
    %c1_26 = arith.constant 1 : index
    %c1_27 = arith.constant 1 : index
    %c0_28 = arith.constant 0 : index
    %c0_29 = arith.constant 0 : index
    %31 = vector.load %arg1[%c1_26, %c1_27, %c0_28, %c0_29] : memref<2x2x64x64xbf16, #tpu.memory_space<vmem>>, vector<1x1x64x64xbf16>
    %32 = vector.shape_cast %31 : vector<1x1x64x64xbf16> to vector<64x64xbf16>
    %cst_30 = arith.constant dense<0.000000e+00> : vector<8x64xf32>
    %33 = tpu.matmul %30, %32, %cst_30 {dimension_numbers = #tpu.dot_dimension_numbers<[1], [0], [0], [1], [0, 0, 1, 1], [], []>} : vector<8x64xbf16>, vector<64x64xbf16>, vector<8x64xf32> -> vector<8x64xf32>
    %34 = arith.addf %18, %33 : vector<8x64xf32>
    %c0_31 = arith.constant 0 : index
    %c0_32 = arith.constant 0 : index
    %35 = vector.load %arg3[%c0_31, %c0_32] : memref<8x64xf32, #tpu.memory_space<vmem>>, vector<8x64xf32>
    tpu.vector_store %arg3[%c0_31, %c0_32], %34 {strides = array<i32>} : memref<8x64xf32, #tpu.memory_space<vmem>>, vector<8x64xf32>,
    return
  }
}

</mosaic_0001>

<llo_original>
// kernel: tpu_custom_call.1
$region0: #{tpu_custom_call.1}
  #allocation0 [shape = 'u32[]', space=smem, size = 0x4, offset = 0x4, fixed_abs, tag = 'smem constant byte address 0x4 - core index']
  #allocation1 [shape = 'u32[144,128]{1,0:T(1,128)}', space=vmem, size = 0x12000, scoped, tag = 'internal scratch']
  %s0 = inlined_call_operand.hbm [shape: bf16[8,72], index: 0, kind: input, shape index: {}]
  %s1 = inlined_call_operand.hbm [shape: bf16[2,2,64,64], index: 1, kind: input, shape index: {}]
  %s2 = inlined_call_operand.vmem [shape: f32[2,1,64], index: 2, kind: input, shape index: {}]
  %s3 = inlined_call_operand.hbm [shape: f32[8,64], index: 3, kind: output, shape index: {}]
  %s4 = sld [smem:[#allocation0]]
  $region30: #{tpu_custom_call.1} parent=0
    _
  %s6 = ssub.s32 1, %s4
  %s7 = scalar_select 0, %s6, %s4
  $region1: #{tpu_custom_call.1} parent=0
    #allocation2 [shape = 'u8[2048]{0}', space=vmem, size = 0x800, scoped, tag = 'input window, operand 0, single buffered']
    #allocation3 [shape = 's32[1]{0}', space=sflag, size = 0x4, scoped, tag = 'scoped memory for tpu_custom_call.1']
    #allocation4 [shape = 's32[1]{0}', space=sflag, size = 0x4, scoped, tag = 'scoped memory for tpu_custom_call.1']
    #allocation5 [shape = 'u8[65536]{0}', space=vmem, size = 0x10000, scoped, tag = 'input window, operand 1, single buffered']
    #allocation6 [shape = 's32[1]{0}', space=sflag, size = 0x4, scoped, tag = 'scoped memory for tpu_custom_call.1']
    #allocation7 [shape = 'u8[4096]{0}', space=vmem, size = 0x1000, scoped, tag = 'output window, operand 0, single buffered']
    %8 = vsyncpa [#allocation3], 0
    %9 = vsyncpa [#allocation6], 0
    %10 = vsyncpa [#allocation4], 0
    // Predicated region
    $region2: #{tpu_custom_call.1} parent=1 // pred_check
      _
    $region3: #{tpu_custom_call.1} parent=1 // pred_check_branch
      %12 = sbr.rel (0) target = $region5
    $region4: #{tpu_custom_call.1} parent=1 // pred_region
      %s14 = ssub.s32 64, 64
      %15 = vsyncadd [#allocation3], %s14
      %s17 = sshll.u32 [#allocation2], 4
      %s18 = int_to_ptr.vmem [resolvable:$true] %s17
      %20 = dma.hbm_to_vmem [thread:$0]  %s0, 64, %s18, [#allocation3]
    $region5: #{tpu_custom_call.1} parent=1 // pred_fallthru
      _
    // Predicated region
    $region6: #{tpu_custom_call.1} parent=1 // pred_check
      _
    $region7: #{tpu_custom_call.1} parent=1 // pred_check_branch
      %22 = sbr.rel (0) target = $region9
    $region8: #{tpu_custom_call.1} parent=1 // pred_region
      %s24 = ssub.s32 2048, 2048
      %25 = vsyncadd [#allocation6], %s24
      %s26 = sshll.u32 [#allocation5], 4
      %s27 = int_to_ptr.vmem [resolvable:$true] %s26
      %32 = dma.hbm_to_vmem [thread:$0]  %s1, 2048, %s27, [#allocation6], 64, 64, 4
    $region9: #{tpu_custom_call.1} parent=1 // pred_fallthru
      _
    // Predicated region
    $region10: #{tpu_custom_call.1} parent=1 // pred_check
      _
    $region11: #{tpu_custom_call.1} parent=1 // pred_check_branch
      %34 = sbr.rel (0) target = $region13
    $region12: #{tpu_custom_call.1} parent=1 // pred_region
      _
    $region13: #{tpu_custom_call.1} parent=1 // pred_fallthru
      _
    // Predicated region
    $region14: #{tpu_custom_call.1} parent=1 // pred_check
      _
    $region15: #{tpu_custom_call.1} parent=1 // pred_check_branch
      %36 = sbr.rel (0) target = $region17
    $region16: #{tpu_custom_call.1} parent=1 // pred_region
      %37 = dma.done [#allocation3], 64
    $region17: #{tpu_custom_call.1} parent=1 // pred_fallthru
      _
    // Predicated region
    $region18: #{tpu_custom_call.1} parent=1 // pred_check
      _
    $region19: #{tpu_custom_call.1} parent=1 // pred_check_branch
      %39 = sbr.rel (0) target = $region21
    $region20: #{tpu_custom_call.1} parent=1 // pred_region
      %40 = dma.done [#allocation6], 2048
    $region21: #{tpu_custom_call.1} parent=1 // pred_fallthru
      _
    %v42 = vld [vmem:[#allocation2] sm:$0xf]
    %v44 = vunpack.c.l.b16 %v42
    %v45 = vpack.c.b16 %v44, %v44
    %46 = vrot.lane.b32.xlu0 %v45, 64
    %v47 = vpop.permute.xlu0 %46
    %vm48 = vcmask 64512
    %v50 = vsel %vm48, %v47, 0
    %vm52 = vcmask 1043456
    %v54 = vsel %vm52, %v42, 0
    %56 = vmatprep.subr.bf16.mxu0 0
    %57 = vmatpush1.bf16.msra.mxu0 %v54
    %58 = vmatprep.subr.bf16.mxu0 0
    %59 = vmatpush1.bf16.msra.mxu0 0
    %60 = vmatprep.subr.bf16.mxu0 0
    %61 = vmatpush1.bf16.msra.mxu0 0
    %62 = vmatprep.subr.bf16.mxu0 0
    %63 = vmatpush1.bf16.msra.mxu0 0
    %64 = vmatprep.subr.bf16.mxu0 0
    %65 = vmatpush1.bf16.msra.mxu0 0
    %66 = vmatprep.subr.bf16.mxu0 0
    %67 = vmatpush1.bf16.msra.mxu0 0
    %68 = vmatprep.subr.bf16.mxu0 0
    %69 = vmatpush1.bf16.msra.mxu0 0
    %70 = vmatprep.subr.bf16.mxu0 0
    %71 = vmatpush1.bf16.msra.mxu0 0
    %72 = vmatprep.subr.bf16.mxu0 0
    %73 = vmatpush1.bf16.msra.mxu0 0
    %74 = vmatprep.subr.bf16.mxu0 0
    %75 = vmatpush1.bf16.msra.mxu0 0
    %76 = vmatprep.subr.bf16.mxu0 0
    %77 = vmatpush1.bf16.msra.mxu0 0
    %78 = vmatprep.subr.bf16.mxu0 0
    %79 = vmatpush1.bf16.msra.mxu0 0
    %80 = vmatprep.subr.bf16.mxu0 0
    %81 = vmatpush1.bf16.msra.mxu0 0
    %82 = vmatprep.subr.bf16.mxu0 0
    %83 = vmatpush1.bf16.msra.mxu0 0
    %84 = vmatprep.subr.bf16.mxu0 0
    %85 = vmatpush1.bf16.msra.mxu0 0
    %86 = vmatprep.subr.bf16.mxu0 0
    %87 = vmatpush1.bf16.msra.mxu0 0
    %88 = vmatprep.mubr.bf16.mxu0 0
    %89 = vmatmul.mubr.bf16.gmra.mrb[0].mxu0 %v50
    %v90 = vpop.f32.mrb[0].mxu0
    %v91 = vadd.f32 0.0, %v90
    %v92 = vpop.f32.mrb[0].mxu0
    %v93 = vpop.f32.mrb[0].mxu0
    %v94 = vpop.f32.mrb[0].mxu0
    %95 = vdwg.mxu0
    %v96 = vpack.c.bf16 %v91, %v91
    %v97 = vld [vmem:[#allocation5] sm:$0xf]
    %v98 = vld [vmem:[#allocation5 + $0x4] sm:$0xf]
    %v99 = vld [vmem:[#allocation5 + $0x8] sm:$0xf]
    %v100 = vld [vmem:[#allocation5 + $0xc] sm:$0xf]
    %v101 = vld [vmem:[#allocation5 + $0x10] sm:$0xf]
    %v102 = vld [vmem:[#allocation5 + $0x14] sm:$0xf]
    %v103 = vld [vmem:[#allocation5 + $0x18] sm:$0xf]
    %v104 = vld [vmem:[#allocation5 + $0x1c] sm:$0xf]
    %v105 = vld [vmem:[%s2] sm:$0x1]
    %v107 = vlaneseq
    %v108 = vshrl.u32 %v107, 7
    %v109 = vsub.s32 0, %v108
    %v110 = vrot.slane %v105, %v109
    %v120 = vunpack.c.l.b16 %v97
    %v121 = vunpack.c.l.b16 %v98
    %v122 = vunpack.c.l.b16 %v99
    %v123 = vunpack.c.l.b16 %v100
    %v124 = vunpack.c.l.b16 %v101
    %v125 = vunpack.c.l.b16 %v102
    %v126 = vunpack.c.l.b16 %v103
    %v127 = vunpack.c.l.b16 %v104
    %v128 = vpack.c.b16 %v121, %v120
    %v129 = vpack.c.b16 %v123, %v122
    %v130 = vpack.c.b16 %v125, %v124
    %v131 = vpack.c.b16 %v127, %v126
    %vm136 = vcmask 523264
    %v138 = vsel %vm136, %v96, 0
    %140 = vmatprep.subr.bf16.mxu0 0
    %141 = vmatpush1.bf16.msra.mxu0 %v128
    %142 = vmatprep.subr.bf16.mxu0 0
    %143 = vmatpush1.bf16.msra.mxu0 %v129
    %144 = vmatprep.subr.bf16.mxu0 0
    %145 = vmatpush1.bf16.msra.mxu0 %v130
    %146 = vmatprep.subr.bf16.mxu0 0
    %147 = vmatpush1.bf16.msra.mxu0 %v131
    %148 = vmatprep.subr.bf16.mxu0 0
    %149 = vmatpush1.bf16.msra.mxu0 0
    %150 = vmatprep.subr.bf16.mxu0 0
    %151 = vmatpush1.bf16.msra.mxu0 0
    %152 = vmatprep.subr.bf16.mxu0 0
    %153 = vmatpush1.bf16.msra.mxu0 0
    %154 = vmatprep.subr.bf16.mxu0 0
    %155 = vmatpush1.bf16.msra.mxu0 0
    %156 = vmatprep.subr.bf16.mxu0 0
    %157 = vmatpush1.bf16.msra.mxu0 0
    %158 = vmatprep.subr.bf16.mxu0 0
    %159 = vmatpush1.bf16.msra.mxu0 0
    %160 = vmatprep.subr.bf16.mxu0 0
    %161 = vmatpush1.bf16.msra.mxu0 0
    %162 = vmatprep.subr.bf16.mxu0 0
    %163 = vmatpush1.bf16.msra.mxu0 0
    %164 = vmatprep.subr.bf16.mxu0 0
    %165 = vmatpush1.bf16.msra.mxu0 0
    %166 = vmatprep.subr.bf16.mxu0 0
    %167 = vmatpush1.bf16.msra.mxu0 0
    %168 = vmatprep.subr.bf16.mxu0 0
    %169 = vmatpush1.bf16.msra.mxu0 0
    %170 = vmatprep.subr.bf16.mxu0 0
    %171 = vmatpush1.bf16.msra.mxu0 0
    %172 = vmatprep.mubr.bf16.mxu0 0
    %173 = vmatmul.mubr.bf16.gmra.mrb[0].mxu0 %v138
    %v174 = vpop.f32.mrb[0].mxu0
    %v175 = vadd.f32 %v110, %v174
    %v176 = vpop.f32.mrb[0].mxu0
    %v177 = vpop.f32.mrb[0].mxu0
    %v178 = vpop.f32.mrb[0].mxu0
    %179 = vdwg.mxu0
    %v180 = vmax.f32 %v175, 0.0
    %v181 = vpack.c.bf16 %v180, %v180
    %s182 = scalar_lea.vmem [#allocation5], 32
    %v183 = vld [vmem:[%s182] sm:$0xf]
    %v184 = vld [vmem:[%s182 + $0x4] sm:$0xf]
    %v185 = vld [vmem:[%s182 + $0x8] sm:$0xf]
    %v186 = vld [vmem:[%s182 + $0xc] sm:$0xf]
    %v187 = vld [vmem:[%s182 + $0x10] sm:$0xf]
    %v188 = vld [vmem:[%s182 + $0x14] sm:$0xf]
    %v189 = vld [vmem:[%s182 + $0x18] sm:$0xf]
    %v190 = vld [vmem:[%s182 + $0x1c] sm:$0xf]
    %v192 = vsel %vm52, %v181, 0
    %194 = vmatprep.subr.bf16.mxu0 0
    %195 = vmatpush1.bf16.msra.mxu0 %v192
    %196 = vmatprep.subr.bf16.mxu0 0
    %197 = vmatpush1.bf16.msra.mxu0 0
    %198 = vmatprep.subr.bf16.mxu0 0
    %199 = vmatpush1.bf16.msra.mxu0 0
    %200 = vmatprep.subr.bf16.mxu0 0
    %201 = vmatpush1.bf16.msra.mxu0 0
    %202 = vmatprep.subr.bf16.mxu0 0
    %203 = vmatpush1.bf16.msra.mxu0 0
    %204 = vmatprep.subr.bf16.mxu0 0
    %205 = vmatpush1.bf16.msra.mxu0 0
    %206 = vmatprep.subr.bf16.mxu0 0
    %207 = vmatpush1.bf16.msra.mxu0 0
    %208 = vmatprep.subr.bf16.mxu0 0
    %209 = vmatpush1.bf16.msra.mxu0 0
    %210 = vmatprep.subr.bf16.mxu0 0
    %211 = vmatpush1.bf16.msra.mxu0 0
    %212 = vmatprep.subr.bf16.mxu0 0
    %213 = vmatpush1.bf16.msra.mxu0 0
    %214 = vmatprep.subr.bf16.mxu0 0
    %215 = vmatpush1.bf16.msra.mxu0 0
    %216 = vmatprep.subr.bf16.mxu0 0
    %217 = vmatpush1.bf16.msra.mxu0 0
    %218 = vmatprep.subr.bf16.mxu0 0
    %219 = vmatpush1.bf16.msra.mxu0 0
    %220 = vmatprep.subr.bf16.mxu0 0
    %221 = vmatpush1.bf16.msra.mxu0 0
    %222 = vmatprep.subr.bf16.mxu0 0
    %223 = vmatpush1.bf16.msra.mxu0 0
    %224 = vmatprep.subr.bf16.mxu0 0
    %225 = vmatpush1.bf16.msra.mxu0 0
    %226 = vmatprep.mubr.bf16.mxu0 0
    %227 = vmatmul.mubr.bf16.gmra.mrb[0].mxu0 %v50
    %v228 = vpop.f32.mrb[0].mxu0
    %v229 = vadd.f32 0.0, %v228
    %v230 = vpop.f32.mrb[0].mxu0
    %v231 = vpop.f32.mrb[0].mxu0
    %v232 = vpop.f32.mrb[0].mxu0
    %233 = vdwg.mxu0
    %v234 = vpack.c.bf16 %v229, %v229
    %s235 = scalar_lea.vmem [#allocation5], 64
    %v236 = vld [vmem:[%s235] sm:$0xf]
    %v237 = vld [vmem:[%s235 + $0x4] sm:$0xf]
    %v238 = vld [vmem:[%s235 + $0x8] sm:$0xf]
    %v239 = vld [vmem:[%s235 + $0xc] sm:$0xf]
    %v240 = vld [vmem:[%s235 + $0x10] sm:$0xf]
    %v241 = vld [vmem:[%s235 + $0x14] sm:$0xf]
    %v242 = vld [vmem:[%s235 + $0x18] sm:$0xf]
    %v243 = vld [vmem:[%s235 + $0x1c] sm:$0xf]
    %s244 = scalar_lea.vmem %s2, 1
    %v245 = vld [vmem:[%s244] sm:$0x1]
    %v247 = vlaneseq
    %v248 = vshrl.u32 %v247, 7
    %v249 = vsub.s32 0, %v248
    %v250 = vrot.slane %v245, %v249
    %v260 = vunpack.c.l.b16 %v236
    %v261 = vunpack.c.l.b16 %v237
    %v262 = vunpack.c.l.b16 %v238
    %v263 = vunpack.c.l.b16 %v239
    %v264 = vunpack.c.l.b16 %v240
    %v265 = vunpack.c.l.b16 %v241
    %v266 = vunpack.c.l.b16 %v242
    %v267 = vunpack.c.l.b16 %v243
    %v268 = vpack.c.b16 %v261, %v260
    %v269 = vpack.c.b16 %v263, %v262
    %v270 = vpack.c.b16 %v265, %v264
    %v271 = vpack.c.b16 %v267, %v266
    %v277 = vsel %vm136, %v234, 0
    %279 = vmatprep.subr.bf16.mxu0 0
    %280 = vmatpush1.bf16.msra.mxu0 %v268
    %281 = vmatprep.subr.bf16.mxu0 0
    %282 = vmatpush1.bf16.msra.mxu0 %v269
    %283 = vmatprep.subr.bf16.mxu0 0
    %284 = vmatpush1.bf16.msra.mxu0 %v270
    %285 = vmatprep.subr.bf16.mxu0 0
    %286 = vmatpush1.bf16.msra.mxu0 %v271
    %287 = vmatprep.subr.bf16.mxu0 0
    %288 = vmatpush1.bf16.msra.mxu0 0
    %289 = vmatprep.subr.bf16.mxu0 0
    %290 = vmatpush1.bf16.msra.mxu0 0
    %291 = vmatprep.subr.bf16.mxu0 0
    %292 = vmatpush1.bf16.msra.mxu0 0
    %293 = vmatprep.subr.bf16.mxu0 0
    %294 = vmatpush1.bf16.msra.mxu0 0
    %295 = vmatprep.subr.bf16.mxu0 0
    %296 = vmatpush1.bf16.msra.mxu0 0
    %297 = vmatprep.subr.bf16.mxu0 0
    %298 = vmatpush1.bf16.msra.mxu0 0
    %299 = vmatprep.subr.bf16.mxu0 0
    %300 = vmatpush1.bf16.msra.mxu0 0
    %301 = vmatprep.subr.bf16.mxu0 0
    %302 = vmatpush1.bf16.msra.mxu0 0
    %303 = vmatprep.subr.bf16.mxu0 0
    %304 = vmatpush1.bf16.msra.mxu0 0
    %305 = vmatprep.subr.bf16.mxu0 0
    %306 = vmatpush1.bf16.msra.mxu0 0
    %307 = vmatprep.subr.bf16.mxu0 0
    %308 = vmatpush1.bf16.msra.mxu0 0
    %309 = vmatprep.subr.bf16.mxu0 0
    %310 = vmatpush1.bf16.msra.mxu0 0
    %311 = vmatprep.mubr.bf16.mxu0 0
    %312 = vmatmul.mubr.bf16.gmra.mrb[0].mxu0 %v277
    %v313 = vpop.f32.mrb[0].mxu0
    %v314 = vadd.f32 %v250, %v313
    %v315 = vpop.f32.mrb[0].mxu0
    %v316 = vpop.f32.mrb[0].mxu0
    %v317 = vpop.f32.mrb[0].mxu0
    %318 = vdwg.mxu0
    %v319 = vmax.f32 %v314, 0.0
    %v320 = vpack.c.bf16 %v319, %v319
    %s321 = scalar_lea.vmem [#allocation5], 96
    %v322 = vld [vmem:[%s321] sm:$0xf]
    %v323 = vld [vmem:[%s321 + $0x4] sm:$0xf]
    %v324 = vld [vmem:[%s321 + $0x8] sm:$0xf]
    %v325 = vld [vmem:[%s321 + $0xc] sm:$0xf]
    %v326 = vld [vmem:[%s321 + $0x10] sm:$0xf]
    %v327 = vld [vmem:[%s321 + $0x14] sm:$0xf]
    %v328 = vld [vmem:[%s321 + $0x18] sm:$0xf]
    %v329 = vld [vmem:[%s321 + $0x1c] sm:$0xf]
    %v338 = vunpack.c.l.b16 %v322
    %v339 = vunpack.c.l.b16 %v323
    %v340 = vunpack.c.l.b16 %v324
    %v341 = vunpack.c.l.b16 %v325
    %v342 = vunpack.c.l.b16 %v326
    %v343 = vunpack.c.l.b16 %v327
    %v344 = vunpack.c.l.b16 %v328
    %v345 = vunpack.c.l.b16 %v329
    %v346 = vpack.c.b16 %v339, %v338
    %v347 = vpack.c.b16 %v341, %v340
    %v348 = vpack.c.b16 %v343, %v342
    %v349 = vpack.c.b16 %v345, %v344
    %v355 = vsel %vm136, %v320, 0
    %357 = vmatprep.subr.bf16.mxu0 0
    %358 = vmatpush1.bf16.msra.mxu0 %v346
    %359 = vmatprep.subr.bf16.mxu0 0
    %360 = vmatpush1.bf16.msra.mxu0 %v347
    %361 = vmatprep.subr.bf16.mxu0 0
    %362 = vmatpush1.bf16.msra.mxu0 %v348
    %363 = vmatprep.subr.bf16.mxu0 0
    %364 = vmatpush1.bf16.msra.mxu0 %v349
    %365 = vmatprep.subr.bf16.mxu0 0
    %366 = vmatpush1.bf16.msra.mxu0 0
    %367 = vmatprep.subr.bf16.mxu0 0
    %368 = vmatpush1.bf16.msra.mxu0 0
    %369 = vmatprep.subr.bf16.mxu0 0
    %370 = vmatpush1.bf16.msra.mxu0 0
    %371 = vmatprep.subr.bf16.mxu0 0
    %372 = vmatpush1.bf16.msra.mxu0 0
    %373 = vmatprep.subr.bf16.mxu0 0
    %374 = vmatpush1.bf16.msra.mxu0 0
    %375 = vmatprep.subr.bf16.mxu0 0
    %376 = vmatpush1.bf16.msra.mxu0 0
    %377 = vmatprep.subr.bf16.mxu0 0
    %378 = vmatpush1.bf16.msra.mxu0 0
    %379 = vmatprep.subr.bf16.mxu0 0
    %380 = vmatpush1.bf16.msra.mxu0 0
    %381 = vmatprep.subr.bf16.mxu0 0
    %382 = vmatpush1.bf16.msra.mxu0 0
    %383 = vmatprep.subr.bf16.mxu0 0
    %384 = vmatpush1.bf16.msra.mxu0 0
    %385 = vmatprep.subr.bf16.mxu0 0
    %386 = vmatpush1.bf16.msra.mxu0 0
    %387 = vmatprep.subr.bf16.mxu0 0
    %388 = vmatpush1.bf16.msra.mxu0 0
    %389 = vmatprep.mubr.bf16.mxu0 0
    %390 = vmatmul.mubr.bf16.gmra.mrb[0].mxu0 %v355
    %v391 = vpop.f32.mrb[0].mxu0
    %v392 = vadd.f32 0.0, %v391
    %v393 = vpop.f32.mrb[0].mxu0
    %v394 = vpop.f32.mrb[0].mxu0
    %v395 = vpop.f32.mrb[0].mxu0
    %396 = vdwg.mxu0
    %v405 = vunpack.c.l.b16 %v183
    %v406 = vunpack.c.l.b16 %v184
    %v407 = vunpack.c.l.b16 %v185
    %v408 = vunpack.c.l.b16 %v186
    %v409 = vunpack.c.l.b16 %v187
    %v410 = vunpack.c.l.b16 %v188
    %v411 = vunpack.c.l.b16 %v189
    %v412 = vunpack.c.l.b16 %v190
    %v413 = vpack.c.b16 %v406, %v405
    %v414 = vpack.c.b16 %v408, %v407
    %v415 = vpack.c.b16 %v410, %v409
    %v416 = vpack.c.b16 %v412, %v411
    %v421 = vsel %vm136, %v181, 0
    %423 = vmatprep.subr.bf16.mxu0 0
    %424 = vmatpush1.bf16.msra.mxu0 %v413
    %425 = vmatprep.subr.bf16.mxu0 0
    %426 = vmatpush1.bf16.msra.mxu0 %v414
    %427 = vmatprep.subr.bf16.mxu0 0
    %428 = vmatpush1.bf16.msra.mxu0 %v415
    %429 = vmatprep.subr.bf16.mxu0 0
    %430 = vmatpush1.bf16.msra.mxu0 %v416
    %431 = vmatprep.subr.bf16.mxu0 0
    %432 = vmatpush1.bf16.msra.mxu0 0
    %433 = vmatprep.subr.bf16.mxu0 0
    %434 = vmatpush1.bf16.msra.mxu0 0
    %435 = vmatprep.subr.bf16.mxu0 0
    %436 = vmatpush1.bf16.msra.mxu0 0
    %437 = vmatprep.subr.bf16.mxu0 0
    %438 = vmatpush1.bf16.msra.mxu0 0
    %439 = vmatprep.subr.bf16.mxu0 0
    %440 = vmatpush1.bf16.msra.mxu0 0
    %441 = vmatprep.subr.bf16.mxu0 0
    %442 = vmatpush1.bf16.msra.mxu0 0
    %443 = vmatprep.subr.bf16.mxu0 0
    %444 = vmatpush1.bf16.msra.mxu0 0
    %445 = vmatprep.subr.bf16.mxu0 0
    %446 = vmatpush1.bf16.msra.mxu0 0
    %447 = vmatprep.subr.bf16.mxu0 0
    %448 = vmatpush1.bf16.msra.mxu0 0
    %449 = vmatprep.subr.bf16.mxu0 0
    %450 = vmatpush1.bf16.msra.mxu0 0
    %451 = vmatprep.subr.bf16.mxu0 0
    %452 = vmatpush1.bf16.msra.mxu0 0
    %453 = vmatprep.subr.bf16.mxu0 0
    %454 = vmatpush1.bf16.msra.mxu0 0
    %455 = vmatprep.mubr.bf16.mxu0 0
    %456 = vmatmul.mubr.bf16.gmra.mrb[0].mxu0 %v421
    %v457 = vpop.f32.mrb[0].mxu0
    %v458 = vadd.f32 %v392, %v457
    %v459 = vpop.f32.mrb[0].mxu0
    %v460 = vpop.f32.mrb[0].mxu0
    %v461 = vpop.f32.mrb[0].mxu0
    %462 = vdwg.mxu0
    %463 = vst.msk [vmem:[#allocation7] sm:$0xff] %vm136, %v458
    // Predicated region
    $region22: #{tpu_custom_call.1} parent=1 // pred_check
      _
    $region23: #{tpu_custom_call.1} parent=1 // pred_check_branch
      %465 = sbr.rel (0) target = $region25
    $region24: #{tpu_custom_call.1} parent=1 // pred_region
      %s467 = ssub.s32 128, 128
      %468 = vsyncadd [#allocation4], %s467
      %s470 = sshll.u32 [#allocation7], 4
      %s471 = int_to_ptr.vmem [resolvable:$true] %s470
      %473 = dma.vmem_to_hbm [thread:$0]  %s471, 128, %s3, [#allocation4]
    $region25: #{tpu_custom_call.1} parent=1 // pred_fallthru
      _
    // Predicated region
    $region26: #{tpu_custom_call.1} parent=1 // pred_check
      _
    $region27: #{tpu_custom_call.1} parent=1 // pred_check_branch
      %475 = sbr.rel (0) target = $region29
    $region28: #{tpu_custom_call.1} parent=1 // pred_region
      %476 = dma.done [#allocation4], 128
    $region29: #{tpu_custom_call.1} parent=1 // pred_fallthru
      _
    %477 = vsyncpa [#allocation3], 1
    %478 = vsyncpa [#allocation6], 1
    %479 = vsyncpa [#allocation4], 1

</llo_original>
